<compile_context>
chip_gen: v6e
topology: v6e:2x2x1
jax: 0.10.0
libtpu: 0.0.40
codegen_flags: <defaults>
</compile_context>

<pallas_src>
import functools
import math

import jax
import jax.numpy as jnp
from jax.experimental import pallas as pl
from jax.experimental.pallas import tpu as pltpu


# ----------------------------------------------------------------------------
# Phase 1: S-tiled streaming mean-pool reduction (per-split partial sums)
# ----------------------------------------------------------------------------
def pool_kernel(enc_ref, psum_ref):
    """enc_ref: [B, TS, F] native dtype (streamed); psum_ref: [1, B, F] f32."""
    @pl.when(pl.program_id(1) == 0)
    def _init():
        psum_ref[...] = jnp.zeros_like(psum_ref)

    # f32 accumulation fused into the reduction -- no f32 tile temp.
    tile_sum = jnp.sum(enc_ref[...], axis=1, dtype=jnp.float32)        # [B, F]
    psum_ref[...] += tile_sum[None]


# ----------------------------------------------------------------------------
# Phase 2: combine + MLP + batch softmax epilogue (runs once, microscopic)
# ----------------------------------------------------------------------------
def epilogue_kernel(psum_ref, kg_ref, w1e_ref, w1k_ref, b1_ref,
                    w2_ref, b2_ref, w3_ref, b3_ref, out_ref,
                    *, seq_len, compute_dtype):
    # mean over S: combine per-split partial sums, scale by 1/S.  The mean of
    # the S-broadcast kg over S is kg itself, so kg is used directly (exact).
    pooled_enc = jnp.sum(psum_ref[...], axis=0) * (1.0 / seq_len)       # [B, F] f32
    kg = kg_ref[...]                                                    # [B, KG] f32

    # Attention gate elided: softmax over a size-1 dim == 1.0 exactly,
    # so attn_w * pooled == pooled bit-for-bit.

    # First MLP layer: cat([enc, kg], -1) @ w1 == enc @ w1[:F] + kg @ w1[F:]
    h = (jnp.dot(pooled_enc.astype(compute_dtype), w1e_ref[...],
                 preferred_element_type=jnp.float32)
         + jnp.dot(kg.astype(compute_dtype), w1k_ref[...],
                   preferred_element_type=jnp.float32)
         + b1_ref[...])
    h = jnp.maximum(h, 0.0)

    h = jnp.dot(h.astype(compute_dtype), w2_ref[...],
                preferred_element_type=jnp.float32) + b2_ref[...]
    h = jnp.maximum(h, 0.0)

    # Width-1 output layer on the VPU/XLU (mul + lane reduce), not an N=1 MXU dot.
    logits = jnp.sum(h * w3_ref[...], axis=-1, keepdims=True) + b3_ref[...]   # [B, 1]

    # softmax over the batch dimension (dim=0), as in the PyTorch module.
    m = jnp.max(logits, axis=0, keepdims=True)
    e = jnp.exp(logits - m)
    out_ref[...] = e / jnp.sum(e, axis=0, keepdims=True)


# ----------------------------------------------------------------------------
# Wrapper helpers
# ----------------------------------------------------------------------------
def _vmem_capacity_bytes():
    try:
        info = pltpu.get_tpu_info()
        cap = getattr(info, "vmem_capacity_bytes", None)
        if cap:
            return int(cap)
    except Exception:
        pass
    return 64 * 1024 * 1024        # conservative fallback: v7x per-TC VMEM


def _sublane_granularity(dtype):
    # rows per vreg: f32 -> 8, bf16 -> 16, int8/fp8 -> 32
    return max(8, 32 // jnp.dtype(dtype).itemsize)


def _auto_seq_tile(B, S, F, itemsize, gran, budget):
    # Largest tile that divides S, respects the dtype's sublane packing, and
    # keeps the double-buffered enc stream inside the streaming VMEM budget.
    for cand in range(S, 0, -1):
        if S % cand:
            continue
        if cand != S and cand % gran:
            continue
        if 2 * B * cand * F * itemsize <= budget:
            return cand
    return S


def prepare_params(params, feat_dim, compute_dtype=jnp.float32):
    """Hoist per-call weight repacking out of the hot path (call once, reuse)."""
    H = params["w2"].shape[0]
    w1 = params["w1"]
    return {
        "w1_enc": jnp.asarray(w1[:feat_dim], compute_dtype),
        "w1_kg":  jnp.asarray(w1[feat_dim:], compute_dtype),
        "b1":     jnp.asarray(params["b1"].reshape(1, H), jnp.float32),
        "w2":     jnp.asarray(params["w2"], compute_dtype),
        "b2":     jnp.asarray(params["b2"].reshape(1, H), jnp.float32),
        "w3_row": jnp.asarray(params["w3"].reshape(1, H), jnp.float32),
        "b3":     jnp.asarray(params["b3"].reshape(1, 1), jnp.float32),
        "compute_dtype": compute_dtype,
    }


# ----------------------------------------------------------------------------
# Forward wrapper
# ----------------------------------------------------------------------------
def eslmkge_forward(encoder_output, kg_embeddings, prep, *,
                    seq_tile=None, num_splits=None):
    """encoder_output: [B, S, F] (streamed in its native dtype);
       kg_embeddings: [B, 1, KG]  ->  [B, 1] f32 softmax over the batch dim."""
    B, S, F = encoder_output.shape
    KG = kg_embeddings.shape[-1]
    compute_dtype = prep["compute_dtype"]

    itemsize = jnp.dtype(encoder_output.dtype).itemsize
    gran = _sublane_granularity(encoder_output.dtype)

    # Generation-aware VMEM budgets (v5e/v6e: 128 MiB, v7x: 64 MiB per TC).
    vmem_cap = _vmem_capacity_bytes()
    stream_budget = vmem_cap // 2
    vmem_limit = int(vmem_cap * 3 // 4)

    if seq_tile is None:
        seq_tile = _auto_seq_tile(B, S, F, itemsize, gran, stream_budget)
    assert S % seq_tile == 0, "seq_tile must divide S"
    assert seq_tile == S or seq_tile % gran == 0, (
        f"seq_tile must be a multiple of {gran} for dtype {encoder_output.dtype}")

    total_tiles = S // seq_tile
    if num_splits is None:
        # Two independent partial sums -> the "parallel" leading grid axis can
        # run one per TensorCore on v7x; harmless (sequential) on 1-TC chips.
        num_splits = 2 if (total_tiles % 2 == 0 and total_tiles >= 2) else 1
    assert total_tiles % num_splits == 0, "num_splits must divide the tile count"
    tiles_per_split = total_tiles // num_splits

    # ---- Phase 1: streaming partial sums over S ----------------------------
    pool_cost = pl.CostEstimate(
        flops=int(B * S * F),
        transcendentals=0,
        bytes_accessed=int(B * S * F * itemsize + num_splits * B * F * 4))

    partial_sums = pl.pallas_call(
        pool_kernel,
        out_shape=jax.ShapeDtypeStruct((num_splits, B, F), jnp.float32),
        grid=(num_splits, tiles_per_split),
        in_specs=[pl.BlockSpec(
            (B, seq_tile, F),
            lambda c, s: (0, c * tiles_per_split + s, 0))],
        out_specs=pl.BlockSpec((1, B, F), lambda c, s: (c, 0, 0)),
        compiler_params=pltpu.CompilerParams(
            dimension_semantics=("parallel", "arbitrary"),
            vmem_limit_bytes=vmem_limit),
        cost_estimate=pool_cost,
    )(encoder_output)

    # ---- Phase 2: combine + MLP + batch softmax -----------------------------
    kg = kg_embeddings.reshape(B, KG).astype(jnp.float32)
    epi_operands = (partial_sums, kg, prep["w1_enc"], prep["w1_kg"], prep["b1"],
                    prep["w2"], prep["b2"], prep["w3_row"], prep["b3"])

    def _full_spec(shape):
        nd = len(shape)
        return pl.BlockSpec(shape, lambda i: (0,) * nd)

    out = pl.pallas_call(
        functools.partial(epilogue_kernel, seq_len=S, compute_dtype=compute_dtype),
        out_shape=jax.ShapeDtypeStruct((B, 1), jnp.float32),
        grid=(1,),
        in_specs=[_full_spec(x.shape) for x in epi_operands],
        out_specs=pl.BlockSpec((B, 1), lambda i: (0, 0)),
        compiler_params=pltpu.CompilerParams(
            dimension_semantics=("arbitrary",)),
    )(*epi_operands)
    return out


# ----------------------------------------------------------------------------
# Deterministic parameter init (PyTorch nn.Linear default: U(-1/sqrt(in), +))
# ----------------------------------------------------------------------------
def init_params(key, feat_dim, kg_dim, mlp_hidden_dim, vocab_size):
    D = feat_dim + kg_dim
    keys = jax.random.split(key, 10)

    def linear(kw, kb, fan_in, fan_out):
        bound = 1.0 / math.sqrt(fan_in)
        w = jax.random.uniform(kw, (fan_in, fan_out), jnp.float32, -bound, bound)
        b = jax.random.uniform(kb, (fan_out,), jnp.float32, -bound, bound)
        return w, b

    params = {}
    params["embedding"] = jax.random.normal(keys[0], (vocab_size, feat_dim), jnp.float32) * 0.02
    params["w_attn"], params["b_attn"] = linear(keys[1], keys[2], D, 1)
    params["w1"], params["b1"] = linear(keys[3], keys[4], D, mlp_hidden_dim)
    params["w2"], params["b2"] = linear(keys[5], keys[6], mlp_hidden_dim, mlp_hidden_dim)
    params["w3"], params["b3"] = linear(keys[7], keys[8], mlp_hidden_dim, 1)
    return params


# Pure-JAX reference of the post-encoder forward (for verification).
def reference_forward(encoder_output, kg_embeddings, params):
    B, S, F = encoder_output.shape
    kg_expanded = jnp.broadcast_to(kg_embeddings, (B, S, kg_embeddings.shape[-1]))
    combined = jnp.concatenate([encoder_output, kg_expanded], axis=-1)   # [B, S, D]
    pooled = combined.mean(axis=1)                                       # [B, D]
    attn_w = jax.nn.softmax(pooled @ params["w_attn"] + params["b_attn"], axis=-1)
    combined_out = attn_w * pooled
    h = jax.nn.relu(combined_out @ params["w1"] + params["b1"])
    h = jax.nn.relu(h @ params["w2"] + params["b2"])
    logits = h @ params["w3"] + params["b3"]
    return jax.nn.softmax(logits, axis=0)


if __name__ == "__main__":
    # Small, module-consistent shapes (prod: F=768, KG=1200, H=512).
    B, S = 2, 16
    FEAT_DIM = 32        # stands in for lm_encoder.config.d_model
    KG_DIM = 64          # stands in for kg_embedding_dim (=1200 in the module)
    MLP_HIDDEN = 32      # stands in for mlp_hidden_dim (=512 in the module)
    VOCAB = 50

    key = jax.random.PRNGKey(0)
    k_ids, k_kg, k_params = jax.random.split(key, 3)

    params = init_params(k_params, FEAT_DIM, KG_DIM, MLP_HIDDEN, VOCAB)

    input_ids = jax.random.randint(k_ids, (B, S), 0, VOCAB, dtype=jnp.int32)
    attention_mask = jnp.ones((B, S), dtype=jnp.float32)  # unused downstream in 'standard' mode
    kg_embeddings = jax.random.normal(k_kg, (B, 1, KG_DIM), dtype=jnp.float32)

    # Synthetic deterministic "LM encoder": embedding-table lookup (glue).
    encoder_output = params["embedding"][input_ids]        # [B, S, FEAT_DIM] f32

    ref = reference_forward(encoder_output, kg_embeddings, params)

    # f32 path, explicit small tile + 2-way split (exercises multi-tile,
    # multi-split accumulation); tight check vs the f32 reference.
    prep_f32 = prepare_params(params, FEAT_DIM, jnp.float32)
    out_f32 = eslmkge_forward(encoder_output, kg_embeddings, prep_f32,
                              seq_tile=8, num_splits=2)
    out_f32 = jax.block_until_ready(out_f32)
    assert out_f32.shape == (B, 1)
    assert jnp.allclose(out_f32, ref, rtol=1e-4, atol=1e-5), (out_f32, ref)

    # bf16-weight MLP path with auto tile/split selection; looser check.
    prep_bf16 = prepare_params(params, FEAT_DIM, jnp.bfloat16)
    out_bf16 = eslmkge_forward(encoder_output, kg_embeddings, prep_bf16)
    out_bf16 = jax.block_until_ready(out_bf16)
    assert out_bf16.shape == (B, 1)
    assert jnp.allclose(out_bf16, ref, rtol=5e-2, atol=3e-2), (out_bf16, ref)

    print("KERNEL_OK")
</pallas_src>

<mosaic_0001>
module attributes {stable_mosaic.version = 11 : i64} {
  func.func @pool_kernel(%arg0: i32, %arg1: i32, %arg2: memref<2x8x32xf32, #tpu.memory_space<vmem>>, %arg3: memref<1x2x32xf32, #tpu.memory_space<vmem>>) attributes {dimension_semantics = [#tpu.dimension_semantics<parallel>, #tpu.dimension_semantics<arbitrary>], iteration_bounds = array<i64: 2, 1>, scalar_prefetch = 0 : i64, scratch_operands = 0 : i64, tpu.core_type = #tpu.core_type<tc>, window_params = [{transform_indices = @transform_0, window_bounds = array<i64: 2, 8, 32>}, {transform_indices = @transform_1, window_bounds = array<i64: 1, 2, 32>}]} {
    %c0_i32 = arith.constant 0 : i32
    %0 = arith.cmpi eq, %arg1, %c0_i32 : i32
    %1 = arith.extui %0 : i1 to i32
    %c0_i32_0 = arith.constant 0 : i32
    %2 = arith.cmpi ne, %1, %c0_i32_0 : i32
    scf.if %2 {
      %cst_9 = arith.constant 0.000000e+00 : f32
      %9 = vector.broadcast %cst_9 : f32 to vector<1x2x32xf32>
      %c0_10 = arith.constant 0 : index
      %c0_11 = arith.constant 0 : index
      %c0_12 = arith.constant 0 : index
      %10 = vector.load %arg3[%c0_10, %c0_11, %c0_12] : memref<1x2x32xf32, #tpu.memory_space<vmem>>, vector<1x2x32xf32>
      tpu.vector_store %arg3[%c0_10, %c0_11, %c0_12], %9 {strides = array<i32>} : memref<1x2x32xf32, #tpu.memory_space<vmem>>, vector<1x2x32xf32>,
    } else {
    }
    %c0 = arith.constant 0 : index
    %c0_1 = arith.constant 0 : index
    %c0_2 = arith.constant 0 : index
    %3 = vector.load %arg2[%c0, %c0_1, %c0_2] : memref<2x8x32xf32, #tpu.memory_space<vmem>>, vector<2x8x32xf32>
    %cst = arith.constant dense<0.000000e+00> : vector<2x32xf32>
    %4 = vector.multi_reduction <add>, %3, %cst [1] : vector<2x8x32xf32> to vector<2x32xf32>
    %c0_3 = arith.constant 0 : index
    %c0_4 = arith.constant 0 : index
    %c0_5 = arith.constant 0 : index
    %5 = vector.load %arg3[%c0_3, %c0_4, %c0_5] : memref<1x2x32xf32, #tpu.memory_space<vmem>>, vector<1x2x32xf32>
    %6 = vector.shape_cast %4 : vector<2x32xf32> to vector<1x2x32xf32>
    %7 = arith.addf %5, %6 : vector<1x2x32xf32>
    %c0_6 = arith.constant 0 : index
    %c0_7 = arith.constant 0 : index
    %c0_8 = arith.constant 0 : index
    %8 = vector.load %arg3[%c0_6, %c0_7, %c0_8] : memref<1x2x32xf32, #tpu.memory_space<vmem>>, vector<1x2x32xf32>
    tpu.vector_store %arg3[%c0_6, %c0_7, %c0_8], %7 {strides = array<i32>} : memref<1x2x32xf32, #tpu.memory_space<vmem>>, vector<1x2x32xf32>,
    return
  }
  func.func @transform_0(%arg0: i32, %arg1: i32) -> (i32, i32, i32) {
    %c1_i32 = arith.constant 1 : i32
    %0 = arith.muli %arg0, %c1_i32 : i32
    %1 = arith.addi %0, %arg1 : i32
    %c0_i32 = arith.constant 0 : i32
    %c0_i32_0 = arith.constant 0 : i32
    %c0_i32_1 = arith.constant 0 : i32
    return %c0_i32, %1, %c0_i32_0 : i32, i32, i32
  }
  func.func @transform_1(%arg0: i32, %arg1: i32) -> (i32, i32, i32) {
    %c0_i32 = arith.constant 0 : i32
    %c0_i32_0 = arith.constant 0 : i32
    %c0_i32_1 = arith.constant 0 : i32
    return %arg0, %c0_i32, %c0_i32_0 : i32, i32, i32
  }
}

</mosaic_0001>

<llo_original>
// kernel: tpu_custom_call.1
$region0: #{tpu_custom_call.1}
  #allocation0 [shape = 'u32[]', space=smem, size = 0x4, offset = 0x4, fixed_abs, tag = 'smem constant byte address 0x4 - core index']
  #allocation1 [shape = 'u32[144,128]{1,0:T(1,128)}', space=vmem, size = 0x12000, scoped, tag = 'internal scratch']
  %s0 = inlined_call_operand.hbm [shape: f32[2,16,32], index: 0, kind: input, shape index: {}]
  %s1 = inlined_call_operand.hbm [shape: f32[2,2,32], index: 1, kind: output, shape index: {}]
  %s2 = sld [smem:[#allocation0]]
  $region45: #{tpu_custom_call.1} parent=0
    _
  %s4 = ssub.s32 1, %s2
  %s5 = scalar_select 0, %s4, %s2
  $region1: #{tpu_custom_call.1} parent=0
    #allocation2 [shape = 'u8[16384]{0}', space=vmem, size = 0x4000, scoped, tag = 'input window, operand 0']
    #allocation3 [shape = 's32[2]{0}', space=sflag, size = 0x8, scoped, tag = 'scoped memory for tpu_custom_call.1']
    #allocation4 [shape = 's32[2]{0}', space=sflag, size = 0x8, scoped, tag = 'scoped memory for tpu_custom_call.1']
    #allocation5 [shape = 'u8[2048]{0}', space=vmem, size = 0x800, scoped, tag = 'output window, operand 0']
    %6 = vsyncpa [#allocation3], 0
    %s7 = scalar_lea.sflag [#allocation3], 1
    %8 = vsyncpa %s7, 0
    %9 = vsyncpa [#allocation4], 0
    %s10 = scalar_lea.sflag [#allocation4], 1
    %11 = vsyncpa %s10, 0
    loop: start=0, step=1, limit=4
    $region2: #{tpu_custom_call.1} parent=1 // loop_pre_header
      _
    $region3: #{tpu_custom_call.1} parent=1 // loop_header
      %s13 = sphi 0, %s17
      %p14 = scmp.ge.s32.totalorder %s13, 4
      %s20 = sphi 0, %s32
      %s21 = sphi 0, %s28
      %s22 = sphi 0, %s20
      %s23 = sphi 0, %s21
      %s24 = sphi 0, %s22
      %s25 = sphi 0, %s23
      %s37 = sphi 0, %s39
      %s40 = sphi 0, %s37
      %s41 = sphi 0, %s40
      %s57 = sphi 0, %s41
      %s63 = sphi 0, %s65
      %s66 = sphi 0, %s63
      %s67 = sphi 0, %s66
      %s83 = sphi 0, %s67
    $region4: #{tpu_custom_call.1} parent=1 // loop_header_branch
      %16 = sbr.rel (%p14) target = $region8
    $region5: #{tpu_custom_call.1} parent=1 // loop_body
      %s18 = ssub.s32 %s13, 1
      %s19 = ssub.s32 %s13, 2
      %s26 = sadd.s32 1, %s21
      %p27 = scmp.ge.s32.totalorder %s26, 1
      %s28 = scalar_select %p27, 0, %s26
      %s29 = sadd.s32 1, %s20
      %s30 = scalar_select %p27, %s29, %s20
      %p31 = scmp.ge.s32.totalorder %s30, 2
      %s32 = scalar_select %p31, 0, %s30
      %s33 = sadd.s32 %s20, %s21
      %s34 = sadd.s32 %s32, %s28
      %s35 = ssub.s32 %s33, %s34
      %p36 = scmp.eq.s32.totalorder %s35, 0
      %s38 = sadd.s32 %s37, 1
      %s39 = scalar_select %p36, %s37, %s38
      %p42 = pneg %p36
      %p43 = scmp.eq.s32.totalorder %s13, 1
      %p44 = por %p42, %p43
      %p45 = scmp.ne.s32.totalorder %s37, %s40
      %p46 = scmp.eq.s32.totalorder %s13, 0
      %p47 = por %p45, %p46
      %p48 = scmp.ne.s32.totalorder %s37, %s40
      %p49 = scmp.eq.s32.totalorder %s18, 1
      %p50 = por %p48, %p49
      %p51 = scmp.ne.s32.totalorder %s40, %s41
      %p52 = scmp.eq.s32.totalorder %s18, 0
      %p53 = por %p51, %p52
      %p54 = scmp.ne.s32.totalorder %s40, %s41
      %p55 = scmp.eq.s32.totalorder %s19, 1
      %p56 = por %p54, %p55
      %p58 = scmp.ne.s32.totalorder %s41, %s57
      %p59 = scmp.eq.s32.totalorder %s19, 0
      %p60 = por %p58, %p59
      %s61 = ssub.s32 %s20, %s32
      %p62 = scmp.eq.s32.totalorder %s61, 0
      %s64 = sadd.s32 %s63, 1
      %s65 = scalar_select %p62, %s63, %s64
      %p68 = pneg %p62
      %p69 = scmp.eq.s32.totalorder %s13, 1
      %p70 = por %p68, %p69
      %p71 = scmp.ne.s32.totalorder %s63, %s66
      %p72 = scmp.eq.s32.totalorder %s13, 0
      %p73 = por %p71, %p72
      %p74 = scmp.ne.s32.totalorder %s63, %s66
      %p75 = scmp.eq.s32.totalorder %s18, 1
      %p76 = por %p74, %p75
      %p77 = scmp.ne.s32.totalorder %s66, %s67
      %p78 = scmp.eq.s32.totalorder %s18, 0
      %p79 = por %p77, %p78
      %p80 = scmp.ne.s32.totalorder %s66, %s67
      %p81 = scmp.eq.s32.totalorder %s19, 1
      %p82 = por %p80, %p81
      %p84 = scmp.ne.s32.totalorder %s67, %s83
      %p85 = scmp.eq.s32.totalorder %s19, 0
      %p86 = por %p84, %p85
      %p87 = scmp.le.s32.totalorder 1, %s13
      %p88 = scmp.lt.s32.totalorder %s13, 3
      %p89 = pnand %p87, %p88
      %p90 = pneg %p89
      // Predicated region
      $region9: #{tpu_custom_call.1} parent=5 // pred_check
        _
      $region10: #{tpu_custom_call.1} parent=5 // pred_check_branch
        %92 = sbr.rel (%p89) target = $region12
      $region11: #{tpu_custom_call.1} parent=5 // pred_region
        %s93 = ssub.s32 %s13, 1
      $region12: #{tpu_custom_call.1} parent=5 // pred_fallthru
        _
      %p94 = scmp.lt.s32.totalorder %s13, 2
      // Predicated region
      $region13: #{tpu_custom_call.1} parent=5 // pred_check
        %p95 = pneg %p94
      $region14: #{tpu_custom_call.1} parent=5 // pred_check_branch
        %97 = sbr.rel (%p95) target = $region16
      $region15: #{tpu_custom_call.1} parent=5 // pred_region
        // Predicated region
        $region17: #{tpu_custom_call.1} parent=15 // pred_check
          %p98 = pneg %p47
        $region18: #{tpu_custom_call.1} parent=15 // pred_check_branch
          %100 = sbr.rel (%p98) target = $region20
        $region19: #{tpu_custom_call.1} parent=15 // pred_region
          %s101 = sand.u32 %s37, 1
          %s102 = scalar_lea.sflag [#allocation3], %s101
          %s103 = sand.u32 %s37, 1
          %s104 = smul.addr %s103, 16
          %s105 = scalar_lea.vmem [#allocation2], %s104
          %s106 = sadd.s32 %s20, %s21
          %s108 = ssub.s32 256, 256
          %109 = vsyncadd %s102, %s108
          %s110 = smul.addr %s106, 128
          %s111 = scalar_lea.hbm %s0, %s110
          %s112 = sshll.u32 %s105, 4
          %s113 = int_to_ptr.vmem [resolvable:$true] %s112
          %118 = dma.hbm_to_vmem [thread:$0]  %s111, 256, %s113, %s102, 256, 128, 8
        $region20: #{tpu_custom_call.1} parent=15 // pred_fallthru
          _
      $region16: #{tpu_custom_call.1} parent=5 // pred_fallthru
        _
      %p119 = scmp.le.s32.totalorder 1, %s13
      %p120 = scmp.lt.s32.totalorder %s13, 3
      %p121 = pnand %p119, %p120
      %p122 = pneg %p121
      // Predicated region
      $region21: #{tpu_custom_call.1} parent=5 // pred_check
        _
      $region22: #{tpu_custom_call.1} parent=5 // pred_check_branch
        %124 = sbr.rel (%p121) target = $region24
      $region23: #{tpu_custom_call.1} parent=5 // pred_region
        %s125 = ssub.s32 %s13, 1
        %s126 = sand.u32 %s40, 1
        %s127 = scalar_lea.sflag [#allocation3], %s126
        %s128 = sand.u32 %s40, 1
        %s129 = smul.addr %s128, 16
        %s130 = scalar_lea.vmem [#allocation2], %s129
        // Predicated region
        $region25: #{tpu_custom_call.1} parent=23 // pred_check
          %p131 = pneg %p53
        $region26: #{tpu_custom_call.1} parent=23 // pred_check_branch
          %133 = sbr.rel (%p131) target = $region28
        $region27: #{tpu_custom_call.1} parent=23 // pred_region
          %134 = dma.done %s127, 256
        $region28: #{tpu_custom_call.1} parent=23 // pred_fallthru
          _
        %s135 = sand.u32 %s40, 1
        %s136 = scalar_lea.sflag [#allocation3], %s135
        %s137 = sand.u32 %s40, 1
        %s138 = smul.addr %s137, 16
        %s139 = scalar_lea.vmem [#allocation2], %s138
        %p140 = pneg %p53
        %p141 = pneg %p50
        %p142 = pneg %p79
        %p143 = pneg %p76
        %s144 = sand.u32 %s66, 1
        %s145 = scalar_lea.sflag [#allocation4], %s144
        %s146 = sand.u32 %s66, 1
        %s147 = smul.addr %s146, 2
        %s148 = scalar_lea.vmem [#allocation5], %s147
        %s149 = sadd.s32 %s22, %s23
        %p150 = scmp.eq.s32.totalorder %s23, 0
        // Predicated region
        $region29: #{tpu_custom_call.1} parent=23 // pred_check
          %p151 = pneg %p150
        $region30: #{tpu_custom_call.1} parent=23 // pred_check_branch
          %153 = sbr.rel (%p151) target = $region32
        $region31: #{tpu_custom_call.1} parent=23 // pred_region
          %vm154 = vcmask 254976
          %155 = vst.msk [vmem:[%s148] sm:$0x3] %vm154, 0.0
        $region32: #{tpu_custom_call.1} parent=23 // pred_fallthru
          _
        %v156 = vld [vmem:[%s130] sm:$0xff]
        %v157 = vld [vmem:[%s130 + $0x8] sm:$0xff]
        %vm158 = vcmask 261120
        %v159 = vsel %vm158, %v156, 0.0
        %v160 = vrot.slane %v159, 4
        %v161 = vadd.f32 %v159, %v160
        %v162 = vrot.slane %v161, 2
        %v163 = vadd.f32 %v161, %v162
        %v164 = vrot.slane %v163, 1
        %v165 = vadd.f32 %v163, %v164
        %v166 = vsel %vm158, %v157, 0.0
        %v167 = vrot.slane %v166, 4
        %v168 = vadd.f32 %v166, %v167
        %v169 = vrot.slane %v168, 2
        %v170 = vadd.f32 %v168, %v169
        %v171 = vrot.slane %v170, 1
        %v172 = vadd.f32 %v170, %v171
        %v173 = vld [vmem:[%s148] sm:$0x3]
        %vm176 = vcmask 1041409
        %v177 = vsel %vm176, %v172, %v165
        %v179 = vadd.f32 %v173, %v177
        %vm180 = vcmask 254976
        %181 = vst.msk [vmem:[%s148] sm:$0x3] %vm180, %v179
        %s182 = sand.u32 %s66, 1
        %s183 = scalar_lea.sflag [#allocation4], %s182
        %s184 = sand.u32 %s66, 1
        %s185 = smul.addr %s184, 2
        %s186 = scalar_lea.vmem [#allocation5], %s185
        // Predicated region
        $region33: #{tpu_custom_call.1} parent=23 // pred_check
          %p187 = pneg %p76
        $region34: #{tpu_custom_call.1} parent=23 // pred_check_branch
          %189 = sbr.rel (%p187) target = $region36
        $region35: #{tpu_custom_call.1} parent=23 // pred_region
          %s191 = ssub.s32 32, 32
          %192 = vsyncadd %s183, %s191
          %s193 = smul.addr %s22, 32
          %s194 = scalar_lea.hbm %s1, %s193
          %s196 = sshll.u32 %s186, 4
          %s197 = int_to_ptr.vmem [resolvable:$true] %s196
          %199 = dma.vmem_to_hbm [thread:$0]  %s197, 32, %s194, %s183
        $region36: #{tpu_custom_call.1} parent=23 // pred_fallthru
          _
      $region24: #{tpu_custom_call.1} parent=5 // pred_fallthru
        _
      %p200 = scmp.le.s32.totalorder 2, %s13
      // Predicated region
      $region37: #{tpu_custom_call.1} parent=5 // pred_check
        %p201 = pneg %p200
      $region38: #{tpu_custom_call.1} parent=5 // pred_check_branch
        %203 = sbr.rel (%p201) target = $region40
      $region39: #{tpu_custom_call.1} parent=5 // pred_region
        %s204 = ssub.s32 %s13, 2
        // Predicated region
        $region41: #{tpu_custom_call.1} parent=39 // pred_check
          %p205 = pneg %p82
        $region42: #{tpu_custom_call.1} parent=39 // pred_check_branch
          %207 = sbr.rel (%p205) target = $region44
        $region43: #{tpu_custom_call.1} parent=39 // pred_region
          %s208 = sand.u32 %s67, 1
          %s209 = scalar_lea.sflag [#allocation4], %s208
          %s210 = sand.u32 %s67, 1
          %s211 = smul.addr %s210, 2
          %s212 = scalar_lea.vmem [#allocation5], %s211
          %213 = dma.done %s209, 32
        $region44: #{tpu_custom_call.1} parent=39 // pred_fallthru
          _
      $region40: #{tpu_custom_call.1} parent=5 // pred_fallthru
        _
    $region6: #{tpu_custom_call.1} parent=1 // loop_footer
      %s17 = sadd.s32 1, %s13
    $region7: #{tpu_custom_call.1} parent=1 // loop_footer_branch
      %12 = sbr.rel target = $region3
    $region8: #{tpu_custom_call.1} parent=1 // loop_exit
      _
    %214 = vsyncpa [#allocation3], 1
    %s215 = scalar_lea.sflag [#allocation3], 1
    %216 = vsyncpa %s215, 1
    %217 = vsyncpa [#allocation4], 1
    %s218 = scalar_lea.sflag [#allocation4], 1
    %219 = vsyncpa %s218, 1

</llo_original>
